<compile_context>
chip_gen: v7x
topology: tpu7x:2x2x1
jax: 0.10.0
libtpu: 0.0.40
codegen_flags: <defaults>
</compile_context>

<pallas_src>
import jax
import jax.numpy as jnp
from jax.experimental import pallas as pl
from jax.experimental.pallas import tpu as pltpu


def _setblock_kernel(p_ref, w_ref, o_ref):
    # p_ref: (1, 9*Cin, 4*Q)  im2col patches, lane order (hp, wp, b, ho, wo)
    #                         where (hp, wp) indexes the 2x2 pool window.
    # w_ref: (Cout, 9*Cin)    flattened conv weights.
    # o_ref: (1, Cout, Q)     pooled output, Q = B*Ho*Wo (multiple of 128).
    q = o_ref.shape[2]

    # Fused 3x3 conv: single MXU matmul, K = 9*Cin, N = 4*Q lanes, f32 acc.
    y = jnp.dot(w_ref[...], p_ref[0],
                preferred_element_type=jnp.float32)          # (Cout, 4*Q) f32

    # LeakyReLU (negative_slope = 0.01, PyTorch default) -- f32 on the VPU.
    y = jnp.where(y > 0, y, 0.01 * y)

    # MaxPool2d(2): the four window elements live in four contiguous,
    # 128-aligned lane chunks -> three VPU maximums, no relayout.
    m = jnp.maximum(jnp.maximum(y[:, 0 * q:1 * q], y[:, 1 * q:2 * q]),
                    jnp.maximum(y[:, 2 * q:3 * q], y[:, 3 * q:4 * q]))

    o_ref[0, :, :] = m.astype(o_ref.dtype)


def _pick_frames_per_block(ns, frame_patch_bytes, budget_bytes):
    """Largest divisor of `ns` whose patch block fits the VMEM budget while
    keeping the grid length >= 2 (so the parallel axis can use both v7x TCs).
    Budget should leave headroom for double-buffering (2x) and the weight."""
    best = 1
    for b in range(1, ns + 1):
        if ns % b:
            continue
        if b * frame_patch_bytes > budget_bytes:
            break
        if ns // b >= 2:
            best = b
    return best


def set_block_forward(x, w, *, compute_dtype=jnp.bfloat16,
                      vmem_budget_bytes=4 << 20):
    """SetBlock(BasicConv2d(Cin, Cout, 3, padding=1) + LeakyReLU, pooling=True).

    x: (N, S, Cin, H, W) float32   (PyTorch NCHW per frame)
    w: (Cout, Cin, 3, 3) float32   (PyTorch OIHW conv weight, no bias)
    returns: (N, S, Cout, H//2, W//2) float32
    """
    n, s, c, h, wdt = x.shape
    cout, cin, kh3, kw3 = w.shape
    assert cin == c and kh3 == 3 and kw3 == 3
    assert h % 2 == 0 and wdt % 2 == 0, "MaxPool2d(2) needs even H, W"

    ns = n * s
    ho, wo = h // 2, wdt // 2
    kc = 9 * c                       # fused contraction length
    hw = h * wdt

    # ---------------- wrapper-side glue (pure XLA, fused by the compiler) ---
    # Flatten the set dim, cast to the MXU dtype, pad spatially by 1.
    xb = x.reshape(ns, c, h, wdt).astype(compute_dtype)
    xp = jnp.pad(xb, ((0, 0), (0, 0), (1, 1), (1, 1)))        # (NS, C, H+2, W+2)

    # im2col: 9 shifted taps, stacked as the (tap, cin) contraction axis.
    taps = [xp[:, :, i:i + h, j:j + wdt] for i in range(3) for j in range(3)]
    pat = jnp.stack(taps, axis=1)                             # (NS, 9, C, H, W)
    # Split spatial into (ho, hp, wo, wp) and move the 2x2 pool-window index
    # (hp, wp) to be the OUTERMOST lane factor.
    pat = pat.reshape(ns, kc, ho, 2, wo, 2)
    pat = pat.transpose(0, 1, 3, 5, 2, 4)                     # (NS, KC, 2, 2, Ho, Wo)

    # Batch B frames per grid step.
    itemsize = jnp.dtype(compute_dtype).itemsize
    b = _pick_frames_per_block(ns, kc * hw * itemsize, vmem_budget_bytes)
    g = ns // b
    q = b * ho * wo                                           # pooled lane width

    pat = pat.reshape(g, b, kc, 2, 2, ho, wo)
    pat = pat.transpose(0, 2, 3, 4, 1, 5, 6)                  # (G, KC, 2, 2, B, Ho, Wo)
    pat = pat.reshape(g, kc, 4 * q)                           # lanes: (hp, wp, b, ho, wo)

    # Weight as (Cout, 9*Cin) with the same (tap, cin) ordering.
    w2 = w.transpose(0, 2, 3, 1).reshape(cout, kc).astype(compute_dtype)

    # ---------------- Pallas kernel -----------------------------------------
    out = pl.pallas_call(
        _setblock_kernel,
        grid=(g,),
        in_specs=[
            pl.BlockSpec((1, kc, 4 * q), lambda i: (i, 0, 0)),
            pl.BlockSpec((cout, kc), lambda i: (0, 0)),        # weight resident
        ],
        out_specs=pl.BlockSpec((1, cout, q), lambda i: (i, 0, 0)),
        out_shape=jax.ShapeDtypeStruct((g, cout, q), jnp.float32),
        compiler_params=pltpu.CompilerParams(
            dimension_semantics=("parallel",)),
    )(pat, w2)

    # (G, Cout, B*Ho*Wo) -> (N, S, Cout, Ho, Wo)
    out = out.reshape(g, cout, b, ho, wo).transpose(0, 2, 1, 3, 4)
    return out.reshape(n, s, cout, ho, wo).astype(x.dtype)


if __name__ == "__main__":
    key = jax.random.PRNGKey(0)
    k_x, k_w = jax.random.split(key)

    # Small shapes consistent with the module: batch=2, set=4, cin=4, 16x16 -> cout=8
    N, S, Cin, H, W = 2, 4, 4, 16, 16
    Cout = 8

    x = jax.random.normal(k_x, (N, S, Cin, H, W), dtype=jnp.float32)
    w = jax.random.normal(k_w, (Cout, Cin, 3, 3), dtype=jnp.float32) * 0.1

    out = jax.jit(set_block_forward)(x, w)
    jax.block_until_ready(out)

    # Pure-JAX reference (conv + leaky_relu + maxpool).  Inputs are rounded to
    # bf16 exactly like the kernel's MXU path, so the comparison is tight.
    xq = x.astype(jnp.bfloat16).astype(jnp.float32).reshape(N * S, Cin, H, W)
    wq = w.astype(jnp.bfloat16).astype(jnp.float32)
    ref = jax.lax.conv_general_dilated(
        xq, wq, window_strides=(1, 1), padding=((1, 1), (1, 1)),
        dimension_numbers=("NCHW", "OIHW", "NCHW"),
        precision=jax.lax.Precision.HIGHEST)
    ref = jnp.where(ref > 0, ref, 0.01 * ref)
    ref = ref.reshape(N * S, Cout, H // 2, 2, W // 2, 2).max(axis=(3, 5))
    ref = ref.reshape(N, S, Cout, H // 2, W // 2)

    assert out.shape == (N, S, Cout, H // 2, W // 2), out.shape
    err = float(jnp.max(jnp.abs(out - ref)))
    assert err < 2e-3, err
    print("KERNEL_OK")
</pallas_src>

<mosaic_0001>
module attributes {stable_mosaic.version = 11 : i64} {
  func.func @_setblock_kernel(%arg0: i32, %arg1: memref<1x36x1024xbf16, #tpu.memory_space<vmem>>, %arg2: memref<8x36xbf16, #tpu.memory_space<vmem>>, %arg3: memref<1x8x256xf32, #tpu.memory_space<vmem>>) attributes {dimension_semantics = [#tpu.dimension_semantics<parallel>], iteration_bounds = array<i64: 2>, scalar_prefetch = 0 : i64, scratch_operands = 0 : i64, tpu.core_type = #tpu.core_type<tc>, window_params = [{transform_indices = @transform_0, window_bounds = array<i64: 1, 36, 1024>}, {pipeline_mode = #tpu.pipeline_mode<synchronous>, transform_indices = @transform_1, window_bounds = array<i64: 8, 36>}, {transform_indices = @transform_2, window_bounds = array<i64: 1, 8, 256>}]} {
    %c0 = arith.constant 0 : index
    %c0_0 = arith.constant 0 : index
    %0 = vector.load %arg2[%c0, %c0_0] : memref<8x36xbf16, #tpu.memory_space<vmem>>, vector<8x36xbf16>
    %c0_1 = arith.constant 0 : index
    %c0_2 = arith.constant 0 : index
    %c0_3 = arith.constant 0 : index
    %1 = vector.load %arg1[%c0_1, %c0_2, %c0_3] : memref<1x36x1024xbf16, #tpu.memory_space<vmem>>, vector<1x36x1024xbf16>
    %2 = vector.shape_cast %1 : vector<1x36x1024xbf16> to vector<36x1024xbf16>
    %cst = arith.constant dense<0.000000e+00> : vector<8x1024xf32>
    %3 = tpu.matmul %0, %2, %cst {dimension_numbers = #tpu.dot_dimension_numbers<[1], [0], [0], [1], [0, 0, 1, 1], [], []>} : vector<8x36xbf16>, vector<36x1024xbf16>, vector<8x1024xf32> -> vector<8x1024xf32>
    %cst_4 = arith.constant 0.000000e+00 : f32
    %4 = vector.broadcast %cst_4 : f32 to vector<8x1024xf32>
    %5 = arith.cmpf ogt, %3, %4 : vector<8x1024xf32>
    %cst_5 = arith.constant 0.00999999977 : f32
    %6 = vector.broadcast %cst_5 : f32 to vector<8x1024xf32>
    %7 = arith.mulf %6, %3 : vector<8x1024xf32>
    %8 = arith.select %5, %3, %7 : vector<8x1024xi1>, vector<8x1024xf32>
    %9 = vector.extract_strided_slice %8 {offsets = [0, 0], sizes = [8, 256], strides = [1, 1]} : vector<8x1024xf32> to vector<8x256xf32>
    %10 = vector.extract_strided_slice %8 {offsets = [0, 256], sizes = [8, 256], strides = [1, 1]} : vector<8x1024xf32> to vector<8x256xf32>
    %11 = arith.maximumf %9, %10 : vector<8x256xf32>
    %12 = vector.extract_strided_slice %8 {offsets = [0, 512], sizes = [8, 256], strides = [1, 1]} : vector<8x1024xf32> to vector<8x256xf32>
    %13 = vector.extract_strided_slice %8 {offsets = [0, 768], sizes = [8, 256], strides = [1, 1]} : vector<8x1024xf32> to vector<8x256xf32>
    %14 = arith.maximumf %12, %13 : vector<8x256xf32>
    %15 = arith.maximumf %11, %14 : vector<8x256xf32>
    %c0_6 = arith.constant 0 : index
    %c0_7 = arith.constant 0 : index
    %c0_8 = arith.constant 0 : index
    %16 = vector.load %arg3[%c0_6, %c0_7, %c0_8] : memref<1x8x256xf32, #tpu.memory_space<vmem>>, vector<1x8x256xf32>
    %17 = vector.shape_cast %16 : vector<1x8x256xf32> to vector<8x256xf32>
    %18 = vector.shape_cast %15 : vector<8x256xf32> to vector<1x8x256xf32>
    tpu.vector_store %arg3[%c0_6, %c0_7, %c0_8], %18 {strides = array<i32>} : memref<1x8x256xf32, #tpu.memory_space<vmem>>, vector<1x8x256xf32>,
    return
  }
  func.func @transform_0(%arg0: i32) -> (i32, i32, i32) {
    %c0_i32 = arith.constant 0 : i32
    %c0_i32_0 = arith.constant 0 : i32
    %c0_i32_1 = arith.constant 0 : i32
    return %arg0, %c0_i32, %c0_i32_0 : i32, i32, i32
  }
  func.func @transform_1(%arg0: i32) -> (i32, i32) {
    %c0_i32 = arith.constant 0 : i32
    %c0_i32_0 = arith.constant 0 : i32
    %c0_i32_1 = arith.constant 0 : i32
    return %c0_i32, %c0_i32_0 : i32, i32
  }
  func.func @transform_2(%arg0: i32) -> (i32, i32, i32) {
    %c0_i32 = arith.constant 0 : i32
    %c0_i32_0 = arith.constant 0 : i32
    %c0_i32_1 = arith.constant 0 : i32
    return %arg0, %c0_i32, %c0_i32_0 : i32, i32, i32
  }
}

</mosaic_0001>

<llo_original>
// kernel: set_block_forward.1
$region0: #{set_block_forward.1}
  #allocation0 [shape = 'u32[]', space=smem, size = 0x4, offset = 0x4, fixed_abs, tag = 'smem constant byte address 0x4 - core index']
  #allocation1 [shape = 'u32[144,128]{1,0:T(1,128)}', space=vmem, size = 0x12000, scoped, tag = 'internal scratch']
  %s0 = inlined_call_operand.vmem [shape: bf16[2,36,1024], index: 0, kind: input, shape index: {}]
  %s1 = inlined_call_operand.vmem [shape: bf16[8,36], index: 1, kind: input, shape index: {}]
  %s2 = inlined_call_operand.vmem [shape: f32[2,8,256], index: 2, kind: output, shape index: {}]
  %s3 = sld [smem:[#allocation0]]
  $region41: #{set_block_forward.1} parent=0
    _
  %s5 = ssub.s32 1, %s3
  %s6 = scalar_select 0, %s5, %s3
  loop: start=0, step=1, limit=4
  $region2: #{set_block_forward.1} parent=0 // loop_pre_header
    _
  $region3: #{set_block_forward.1} parent=0 // loop_header
    %s8 = sphi 0, %s12
    %p9 = scmp.ge.s32.totalorder %s8, 4
    %s18 = sphi 0, %s20
    %s21 = sphi 0, %s18
    %s22 = sphi 0, %s21
    %s38 = sphi 0, %s22
    %s42 = sphi 0, %s42
    %s44 = sphi 0, %s42
    %s45 = sphi 0, %s44
    %s59 = sphi 0, %s45
    %s65 = sphi 0, %s67
    %s68 = sphi 0, %s65
    %s69 = sphi 0, %s68
    %s85 = sphi 0, %s69
  $region4: #{set_block_forward.1} parent=0 // loop_header_branch
    %11 = sbr.rel (%p9) target = $region8
  $region5: #{set_block_forward.1} parent=0 // loop_body
    %s13 = ssub.s32 %s8, 1
    %s14 = ssub.s32 %s8, 2
    %s15 = sadd.s32 %s8, 1
    %s16 = ssub.s32 %s8, %s15
    %p17 = scmp.eq.s32.totalorder %s16, 0
    %s19 = sadd.s32 %s18, 1
    %s20 = scalar_select %p17, %s18, %s19
    %p23 = pneg %p17
    %p24 = scmp.eq.s32.totalorder %s8, 1
    %p25 = por %p23, %p24
    %p26 = scmp.ne.s32.totalorder %s18, %s21
    %p27 = scmp.eq.s32.totalorder %s8, 0
    %p28 = por %p26, %p27
    %p29 = scmp.ne.s32.totalorder %s18, %s21
    %p30 = scmp.eq.s32.totalorder %s13, 1
    %p31 = por %p29, %p30
    %p32 = scmp.ne.s32.totalorder %s21, %s22
    %p33 = scmp.eq.s32.totalorder %s13, 0
    %p34 = por %p32, %p33
    %p35 = scmp.ne.s32.totalorder %s21, %s22
    %p36 = scmp.eq.s32.totalorder %s14, 1
    %p37 = por %p35, %p36
    %p39 = scmp.ne.s32.totalorder %s22, %s38
    %p40 = scmp.eq.s32.totalorder %s14, 0
    %p41 = por %p39, %p40
    %s43 = sadd.s32 %s42, 1
    %p46 = scmp.eq.s32.totalorder %s8, 1
    %p47 = scmp.ne.s32.totalorder %s42, %s44
    %p48 = scmp.eq.s32.totalorder %s8, 0
    %p49 = por %p47, %p48
    %p50 = scmp.ne.s32.totalorder %s42, %s44
    %p51 = scmp.eq.s32.totalorder %s13, 1
    %p52 = por %p50, %p51
    %p53 = scmp.ne.s32.totalorder %s44, %s45
    %p54 = scmp.eq.s32.totalorder %s13, 0
    %p55 = por %p53, %p54
    %p56 = scmp.ne.s32.totalorder %s44, %s45
    %p57 = scmp.eq.s32.totalorder %s14, 1
    %p58 = por %p56, %p57
    %p60 = scmp.ne.s32.totalorder %s45, %s59
    %p61 = scmp.eq.s32.totalorder %s14, 0
    %p62 = por %p60, %p61
    %s63 = ssub.s32 %s8, %s15
    %p64 = scmp.eq.s32.totalorder %s63, 0
    %s66 = sadd.s32 %s65, 1
    %s67 = scalar_select %p64, %s65, %s66
    %p70 = pneg %p64
    %p71 = scmp.eq.s32.totalorder %s8, 1
    %p72 = por %p70, %p71
    %p73 = scmp.ne.s32.totalorder %s65, %s68
    %p74 = scmp.eq.s32.totalorder %s8, 0
    %p75 = por %p73, %p74
    %p76 = scmp.ne.s32.totalorder %s65, %s68
    %p77 = scmp.eq.s32.totalorder %s13, 1
    %p78 = por %p76, %p77
    %p79 = scmp.ne.s32.totalorder %s68, %s69
    %p80 = scmp.eq.s32.totalorder %s13, 0
    %p81 = por %p79, %p80
    %p82 = scmp.ne.s32.totalorder %s68, %s69
    %p83 = scmp.eq.s32.totalorder %s14, 1
    %p84 = por %p82, %p83
    %p86 = scmp.ne.s32.totalorder %s69, %s85
    %p87 = scmp.eq.s32.totalorder %s14, 0
    %p88 = por %p86, %p87
    %p89 = scmp.le.s32.totalorder 1, %s8
    %p90 = scmp.lt.s32.totalorder %s8, 3
    %p91 = pnand %p89, %p90
    %p92 = pneg %p91
    // Predicated region
    $region9: #{set_block_forward.1} parent=5 // pred_check
      _
    $region10: #{set_block_forward.1} parent=5 // pred_check_branch
      %94 = sbr.rel (%p91) target = $region12
    $region11: #{set_block_forward.1} parent=5 // pred_region
      %s95 = ssub.s32 %s8, 1
      // Predicated region
      $region13: #{set_block_forward.1} parent=11 // pred_check
        %p96 = pneg %p55
      $region14: #{set_block_forward.1} parent=11 // pred_check_branch
        %98 = sbr.rel (%p96) target = $region16
      $region15: #{set_block_forward.1} parent=11 // pred_region
        _
      $region16: #{set_block_forward.1} parent=11 // pred_fallthru
        _
    $region12: #{set_block_forward.1} parent=5 // pred_fallthru
      _
    %p99 = scmp.lt.s32.totalorder %s8, 2
    // Predicated region
    $region17: #{set_block_forward.1} parent=5 // pred_check
      %p100 = pneg %p99
    $region18: #{set_block_forward.1} parent=5 // pred_check_branch
      %102 = sbr.rel (%p100) target = $region20
    $region19: #{set_block_forward.1} parent=5 // pred_region
      // Predicated region
      $region21: #{set_block_forward.1} parent=19 // pred_check
        %p103 = pneg %p28
      $region22: #{set_block_forward.1} parent=19 // pred_check_branch
        %105 = sbr.rel (%p103) target = $region24
      $region23: #{set_block_forward.1} parent=19 // pred_region
        %p106 = scmp.lt.s32.totalorder %s8, 1
        %s107 = scalar_select %p106, %s8, 1
        %s108 = smul.addr %s107, 40
        %s109 = smul.addr %s108, 4
        %s110 = scalar_lea.vmem %s0, %s109
      $region24: #{set_block_forward.1} parent=19 // pred_fallthru
        _
    $region20: #{set_block_forward.1} parent=5 // pred_fallthru
      _
    %p111 = scmp.le.s32.totalorder 1, %s8
    %p112 = scmp.lt.s32.totalorder %s8, 3
    %p113 = pnand %p111, %p112
    %p114 = pneg %p113
    // Predicated region
    $region25: #{set_block_forward.1} parent=5 // pred_check
      _
    $region26: #{set_block_forward.1} parent=5 // pred_check_branch
      %116 = sbr.rel (%p113) target = $region28
    $region27: #{set_block_forward.1} parent=5 // pred_region
      %s117 = ssub.s32 %s8, 1
      %p118 = scmp.lt.s32.totalorder %s13, 1
      %s119 = scalar_select %p118, %s13, 1
      %s120 = smul.addr %s119, 40
      %s121 = smul.addr %s120, 4
      %s122 = scalar_lea.vmem %s0, %s121
      %p123 = pneg %p34
      %p124 = pneg %p31
      %p125 = pneg %p55
      %p126 = pneg %p52
      %p127 = pneg %p81
      %p128 = pneg %p78
      %p129 = scmp.lt.s32.totalorder %s13, 1
      %s130 = scalar_select %p129, %s13, 1
      %s131 = smul.addr %s130, 2
      %s132 = smul.addr %s131, 8
      %s133 = scalar_lea.vmem %s2, %s132
      %p134 = scmp.lt.s32.totalorder %s13, 1
      %s135 = scalar_select %p134, %s13, 1
      %s136 = smul.addr %s135, 40
      %s137 = smul.addr %s136, 4
      %s138 = scalar_lea.vmem %s0, %s137
      %p139 = scmp.lt.s32.totalorder %s13, 1
      %s140 = scalar_select %p139, %s13, 1
      %s141 = smul.addr %s140, 2
      %s142 = smul.addr %s141, 8
      %s143 = scalar_lea.vmem %s2, %s142
      %v145 = vld [vmem:[%s1] sm:$0xf]
      %v146 = vld [vmem:[%s138] sm:$0xff]
      %v147 = vld [vmem:[%s138 + $0x8] sm:$0xff]
      %v148 = vld [vmem:[%s138 + $0x10] sm:$0xff]
      %v149 = vld [vmem:[%s138 + $0x18] sm:$0xff]
      %v150 = vld [vmem:[%s138 + $0x20] sm:$0xff]
      %v151 = vld [vmem:[%s138 + $0x28] sm:$0xff]
      %v152 = vld [vmem:[%s138 + $0x30] sm:$0xff]
      %v153 = vld [vmem:[%s138 + $0x38] sm:$0xff]
      %v154 = vld [vmem:[%s138 + $0x40] sm:$0xff]
      %v155 = vld [vmem:[%s138 + $0x48] sm:$0xff]
      %v156 = vld [vmem:[%s138 + $0x50] sm:$0xff]
      %v157 = vld [vmem:[%s138 + $0x58] sm:$0xff]
      %v158 = vld [vmem:[%s138 + $0x60] sm:$0xff]
      %v159 = vld [vmem:[%s138 + $0x68] sm:$0xff]
      %v160 = vld [vmem:[%s138 + $0x70] sm:$0xff]
      %v161 = vld [vmem:[%s138 + $0x78] sm:$0xff]
      %v162 = vld [vmem:[%s138 + $0x80] sm:$0x33]
      %v163 = vld [vmem:[%s138 + $0x88] sm:$0x33]
      %v164 = vld [vmem:[%s138 + $0x90] sm:$0x33]
      %v165 = vld [vmem:[%s138 + $0x98] sm:$0x33]
      %v186 = vunpack.c.l.b16 %v146
      %v187 = vunpack.c.h.b16 %v146
      %v188 = vunpack.c.l.b16 %v147
      %v189 = vunpack.c.h.b16 %v147
      %v190 = vunpack.c.l.b16 %v148
      %v191 = vunpack.c.h.b16 %v148
      %v192 = vunpack.c.l.b16 %v149
      %v193 = vunpack.c.h.b16 %v149
      %v194 = vunpack.c.l.b16 %v150
      %v195 = vunpack.c.h.b16 %v150
      %v196 = vunpack.c.l.b16 %v151
      %v197 = vunpack.c.h.b16 %v151
      %v198 = vunpack.c.l.b16 %v152
      %v199 = vunpack.c.h.b16 %v152
      %v200 = vunpack.c.l.b16 %v153
      %v201 = vunpack.c.h.b16 %v153
      %v202 = vunpack.c.l.b16 %v154
      %v203 = vunpack.c.h.b16 %v154
      %v204 = vunpack.c.l.b16 %v155
      %v205 = vunpack.c.h.b16 %v155
      %v206 = vunpack.c.l.b16 %v156
      %v207 = vunpack.c.h.b16 %v156
      %v208 = vunpack.c.l.b16 %v157
      %v209 = vunpack.c.h.b16 %v157
      %v210 = vunpack.c.l.b16 %v158
      %v211 = vunpack.c.h.b16 %v158
      %v212 = vunpack.c.l.b16 %v159
      %v213 = vunpack.c.h.b16 %v159
      %v214 = vunpack.c.l.b16 %v160
      %v215 = vunpack.c.h.b16 %v160
      %v216 = vunpack.c.l.b16 %v161
      %v217 = vunpack.c.h.b16 %v161
      %v218 = vunpack.c.l.b16 %v162
      %v219 = vunpack.c.h.b16 %v162
      %v220 = vunpack.c.l.b16 %v163
      %v221 = vunpack.c.h.b16 %v163
      %v222 = vunpack.c.l.b16 %v164
      %v223 = vunpack.c.h.b16 %v164
      %v224 = vunpack.c.l.b16 %v165
      %v225 = vunpack.c.h.b16 %v165
      %v226 = vpack.c.b16 %v194, %v186
      %v227 = vpack.c.b16 %v195, %v187
      %v228 = vpack.c.b16 %v196, %v188
      %v229 = vpack.c.b16 %v197, %v189
      %v230 = vpack.c.b16 %v198, %v190
      %v231 = vpack.c.b16 %v199, %v191
      %v232 = vpack.c.b16 %v200, %v192
      %v233 = vpack.c.b16 %v201, %v193
      %v234 = vpack.c.b16 %v210, %v202
      %v235 = vpack.c.b16 %v211, %v203
      %v236 = vpack.c.b16 %v212, %v204
      %v237 = vpack.c.b16 %v213, %v205
      %v238 = vpack.c.b16 %v214, %v206
      %v239 = vpack.c.b16 %v215, %v207
      %v240 = vpack.c.b16 %v216, %v208
      %v241 = vpack.c.b16 %v217, %v209
      %v242 = vpack.c.b16 %v218, %v218
      %v243 = vpack.c.b16 %v219, %v219
      %v244 = vpack.c.b16 %v220, %v220
      %v245 = vpack.c.b16 %v221, %v221
      %v246 = vpack.c.b16 %v222, %v222
      %v247 = vpack.c.b16 %v223, %v223
      %v248 = vpack.c.b16 %v224, %v224
      %v249 = vpack.c.b16 %v225, %v225
      %vm266 = vcmask 293888
      %v268 = vsel %vm266, %v145, 0
      %vm270 = vcmask 1041408
      %v272 = vsel %vm270, %v242, 0
      %v275 = vsel %vm270, %v243, 0
      %v278 = vsel %vm270, %v244, 0
      %v281 = vsel %vm270, %v245, 0
      %v284 = vsel %vm270, %v246, 0
      %v287 = vsel %vm270, %v247, 0
      %v290 = vsel %vm270, %v248, 0
      %v293 = vsel %vm270, %v249, 0
      %295 = vmatprep.subr.bf16.mxu0 %v227
      %296 = vmatpush1.bf16.msra.mxu0 %v226
      %297 = vmatprep.subr.bf16.mxu0 %v235
      %298 = vmatpush1.bf16.msra.mxu0 %v234
      %299 = vmatprep.subr.bf16.mxu0 %v275
      %300 = vmatpush1.bf16.msra.mxu0 %v272
      %301 = vmatprep.subr.bf16.mxu0 0
      %302 = vmatpush1.bf16.msra.mxu0 0
      %303 = vmatprep.subr.bf16.mxu0 0
      %304 = vmatpush1.bf16.msra.mxu0 0
      %305 = vmatprep.subr.bf16.mxu0 0
      %306 = vmatpush1.bf16.msra.mxu0 0
      %307 = vmatprep.subr.bf16.mxu0 0
      %308 = vmatpush1.bf16.msra.mxu0 0
      %309 = vmatprep.subr.bf16.mxu0 0
      %310 = vmatpush1.bf16.msra.mxu0 0
      %311 = vmatprep.subr.bf16.mxu0 0
      %312 = vmatpush1.bf16.msra.mxu0 0
      %313 = vmatprep.subr.bf16.mxu0 0
      %314 = vmatpush1.bf16.msra.mxu0 0
      %315 = vmatprep.subr.bf16.mxu0 0
      %316 = vmatpush1.bf16.msra.mxu0 0
      %317 = vmatprep.subr.bf16.mxu0 0
      %318 = vmatpush1.bf16.msra.mxu0 0
      %319 = vmatprep.subr.bf16.mxu0 0
      %320 = vmatpush1.bf16.msra.mxu0 0
      %321 = vmatprep.subr.bf16.mxu0 0
      %322 = vmatpush1.bf16.msra.mxu0 0
      %323 = vmatprep.subr.bf16.mxu0 0
      %324 = vmatpush1.bf16.msra.mxu0 0
      %325 = vmatprep.subr.bf16.mxu0 0
      %326 = vmatpush1.bf16.msra.mxu0 0
      %327 = vmatprep.mubr.bf16.mxu0 0
      %328 = vmatmul.mubr.bf16.gmra.mrb[0].mxu0 %v268
      %v329 = vpop.f32.mrb[0].mxu0
      %v330 = vadd.f32 0.0, %v329
      %v331 = vpop.f32.mrb[0].mxu0
      %v332 = vadd.f32 0.0, %v331
      %v333 = vpop.f32.mrb[0].mxu0
      %v334 = vpop.f32.mrb[0].mxu0
      %335 = vdwg.mxu0
      %336 = vmatprep.subr.bf16.mxu0 %v229
      %337 = vmatpush1.bf16.msra.mxu0 %v228
      %338 = vmatprep.subr.bf16.mxu0 %v237
      %339 = vmatpush1.bf16.msra.mxu0 %v236
      %340 = vmatprep.subr.bf16.mxu0 %v281
      %341 = vmatpush1.bf16.msra.mxu0 %v278
      %342 = vmatprep.subr.bf16.mxu0 0
      %343 = vmatpush1.bf16.msra.mxu0 0
      %344 = vmatprep.subr.bf16.mxu0 0
      %345 = vmatpush1.bf16.msra.mxu0 0
      %346 = vmatprep.subr.bf16.mxu0 0
      %347 = vmatpush1.bf16.msra.mxu0 0
      %348 = vmatprep.subr.bf16.mxu0 0
      %349 = vmatpush1.bf16.msra.mxu0 0
      %350 = vmatprep.subr.bf16.mxu0 0
      %351 = vmatpush1.bf16.msra.mxu0 0
      %352 = vmatprep.subr.bf16.mxu0 0
      %353 = vmatpush1.bf16.msra.mxu0 0
      %354 = vmatprep.subr.bf16.mxu0 0
      %355 = vmatpush1.bf16.msra.mxu0 0
      %356 = vmatprep.subr.bf16.mxu0 0
      %357 = vmatpush1.bf16.msra.mxu0 0
      %358 = vmatprep.subr.bf16.mxu0 0
      %359 = vmatpush1.bf16.msra.mxu0 0
      %360 = vmatprep.subr.bf16.mxu0 0
      %361 = vmatpush1.bf16.msra.mxu0 0
      %362 = vmatprep.subr.bf16.mxu0 0
      %363 = vmatpush1.bf16.msra.mxu0 0
      %364 = vmatprep.subr.bf16.mxu0 0
      %365 = vmatpush1.bf16.msra.mxu0 0
      %366 = vmatprep.subr.bf16.mxu0 0
      %367 = vmatpush1.bf16.msra.mxu0 0
      %368 = vmatprep.mubr.bf16.mxu0 0
      %369 = vmatmul.mubr.bf16.gmra.mrb[0].mxu0 %v268
      %v370 = vpop.f32.mrb[0].mxu0
      %v371 = vadd.f32 0.0, %v370
      %v372 = vpop.f32.mrb[0].mxu0
      %v373 = vadd.f32 0.0, %v372
      %v374 = vpop.f32.mrb[0].mxu0
      %v375 = vpop.f32.mrb[0].mxu0
      %376 = vdwg.mxu0
      %377 = vmatprep.subr.bf16.mxu0 %v231
      %378 = vmatpush1.bf16.msra.mxu0 %v230
      %379 = vmatprep.subr.bf16.mxu0 %v239
      %380 = vmatpush1.bf16.msra.mxu0 %v238
      %381 = vmatprep.subr.bf16.mxu0 %v287
      %382 = vmatpush1.bf16.msra.mxu0 %v284
      %383 = vmatprep.subr.bf16.mxu0 0
      %384 = vmatpush1.bf16.msra.mxu0 0
      %385 = vmatprep.subr.bf16.mxu0 0
      %386 = vmatpush1.bf16.msra.mxu0 0
      %387 = vmatprep.subr.bf16.mxu0 0
      %388 = vmatpush1.bf16.msra.mxu0 0
      %389 = vmatprep.subr.bf16.mxu0 0
      %390 = vmatpush1.bf16.msra.mxu0 0
      %391 = vmatprep.subr.bf16.mxu0 0
      %392 = vmatpush1.bf16.msra.mxu0 0
      %393 = vmatprep.subr.bf16.mxu0 0
      %394 = vmatpush1.bf16.msra.mxu0 0
      %395 = vmatprep.subr.bf16.mxu0 0
      %396 = vmatpush1.bf16.msra.mxu0 0
      %397 = vmatprep.subr.bf16.mxu0 0
      %398 = vmatpush1.bf16.msra.mxu0 0
      %399 = vmatprep.subr.bf16.mxu0 0
      %400 = vmatpush1.bf16.msra.mxu0 0
      %401 = vmatprep.subr.bf16.mxu0 0
      %402 = vmatpush1.bf16.msra.mxu0 0
      %403 = vmatprep.subr.bf16.mxu0 0
      %404 = vmatpush1.bf16.msra.mxu0 0
      %405 = vmatprep.subr.bf16.mxu0 0
      %406 = vmatpush1.bf16.msra.mxu0 0
      %407 = vmatprep.subr.bf16.mxu0 0
      %408 = vmatpush1.bf16.msra.mxu0 0
      %409 = vmatprep.mubr.bf16.mxu0 0
      %410 = vmatmul.mubr.bf16.gmra.mrb[0].mxu0 %v268
      %v411 = vpop.f32.mrb[0].mxu0
      %v412 = vadd.f32 0.0, %v411
      %v413 = vpop.f32.mrb[0].mxu0
      %v414 = vadd.f32 0.0, %v413
      %v415 = vpop.f32.mrb[0].mxu0
      %v416 = vpop.f32.mrb[0].mxu0
      %417 = vdwg.mxu0
      %418 = vmatprep.subr.bf16.mxu0 %v233
      %419 = vmatpush1.bf16.msra.mxu0 %v232
      %420 = vmatprep.subr.bf16.mxu0 %v241
      %421 = vmatpush1.bf16.msra.mxu0 %v240
      %422 = vmatprep.subr.bf16.mxu0 %v293
      %423 = vmatpush1.bf16.msra.mxu0 %v290
      %424 = vmatprep.subr.bf16.mxu0 0
      %425 = vmatpush1.bf16.msra.mxu0 0
      %426 = vmatprep.subr.bf16.mxu0 0
      %427 = vmatpush1.bf16.msra.mxu0 0
      %428 = vmatprep.subr.bf16.mxu0 0
      %429 = vmatpush1.bf16.msra.mxu0 0
      %430 = vmatprep.subr.bf16.mxu0 0
      %431 = vmatpush1.bf16.msra.mxu0 0
      %432 = vmatprep.subr.bf16.mxu0 0
      %433 = vmatpush1.bf16.msra.mxu0 0
      %434 = vmatprep.subr.bf16.mxu0 0
      %435 = vmatpush1.bf16.msra.mxu0 0
      %436 = vmatprep.subr.bf16.mxu0 0
      %437 = vmatpush1.bf16.msra.mxu0 0
      %438 = vmatprep.subr.bf16.mxu0 0
      %439 = vmatpush1.bf16.msra.mxu0 0
      %440 = vmatprep.subr.bf16.mxu0 0
      %441 = vmatpush1.bf16.msra.mxu0 0
      %442 = vmatprep.subr.bf16.mxu0 0
      %443 = vmatpush1.bf16.msra.mxu0 0
      %444 = vmatprep.subr.bf16.mxu0 0
      %445 = vmatpush1.bf16.msra.mxu0 0
      %446 = vmatprep.subr.bf16.mxu0 0
      %447 = vmatpush1.bf16.msra.mxu0 0
      %448 = vmatprep.subr.bf16.mxu0 0
      %449 = vmatpush1.bf16.msra.mxu0 0
      %450 = vmatprep.mubr.bf16.mxu0 0
      %451 = vmatmul.mubr.bf16.gmra.mrb[0].mxu0 %v268
      %v452 = vpop.f32.mrb[0].mxu0
      %v453 = vadd.f32 0.0, %v452
      %v454 = vpop.f32.mrb[0].mxu0
      %v455 = vadd.f32 0.0, %v454
      %v456 = vpop.f32.mrb[0].mxu0
      %v457 = vpop.f32.mrb[0].mxu0
      %458 = vdwg.mxu0
      %vm459 = vcmp.gt.f32.partialorder %v330, 0.0
      %vm460 = vcmp.gt.f32.partialorder %v332, 0.0
      %vm461 = vcmp.gt.f32.partialorder %v371, 0.0
      %vm462 = vcmp.gt.f32.partialorder %v373, 0.0
      %vm463 = vcmp.gt.f32.partialorder %v412, 0.0
      %vm464 = vcmp.gt.f32.partialorder %v414, 0.0
      %vm465 = vcmp.gt.f32.partialorder %v453, 0.0
      %vm466 = vcmp.gt.f32.partialorder %v455, 0.0
      %v467 = vmul.f32 %v330, 0.01
      %v468 = vmul.f32 %v332, 0.01
      %v469 = vmul.f32 %v371, 0.01
      %v470 = vmul.f32 %v373, 0.01
      %v471 = vmul.f32 %v412, 0.01
      %v472 = vmul.f32 %v414, 0.01
      %v473 = vmul.f32 %v453, 0.01
      %v474 = vmul.f32 %v455, 0.01
      %v475 = vsel %vm459, %v330, %v467
      %v476 = vsel %vm460, %v332, %v468
      %v477 = vsel %vm461, %v371, %v469
      %v478 = vsel %vm462, %v373, %v470
      %v479 = vsel %vm463, %v412, %v471
      %v480 = vsel %vm464, %v414, %v472
      %v481 = vsel %vm465, %v453, %v473
      %v482 = vsel %vm466, %v455, %v474
      %v483 = vmax.f32 %v475, %v477
      %v484 = vmax.f32 %v476, %v478
      %v485 = vmax.f32 %v479, %v481
      %v486 = vmax.f32 %v480, %v482
      %v487 = vmax.f32 %v483, %v485
      %v488 = vmax.f32 %v484, %v486
      %489 = vst [vmem:[%s143] sm:$0xff] %v487
      %490 = vst [vmem:[%s143 + $0x8] sm:$0xff] %v488
      %p491 = scmp.lt.s32.totalorder %s13, 1
      %s492 = scalar_select %p491, %s13, 1
      %s493 = smul.addr %s492, 2
      %s494 = smul.addr %s493, 8
      %s495 = scalar_lea.vmem %s2, %s494
      // Predicated region
      $region29: #{set_block_forward.1} parent=27 // pred_check
        %p496 = pneg %p78
      $region30: #{set_block_forward.1} parent=27 // pred_check_branch
        %498 = sbr.rel (%p496) target = $region32
      $region31: #{set_block_forward.1} parent=27 // pred_region
        _
      $region32: #{set_block_forward.1} parent=27 // pred_fallthru
        _
    $region28: #{set_block_forward.1} parent=5 // pred_fallthru
      _
    %p499 = scmp.le.s32.totalorder 2, %s8
    // Predicated region
    $region33: #{set_block_forward.1} parent=5 // pred_check
      %p500 = pneg %p499
    $region34: #{set_block_forward.1} parent=5 // pred_check_branch
      %502 = sbr.rel (%p500) target = $region36
    $region35: #{set_block_forward.1} parent=5 // pred_region
      %s503 = ssub.s32 %s8, 2
      // Predicated region
      $region37: #{set_block_forward.1} parent=35 // pred_check
        %p504 = pneg %p84
      $region38: #{set_block_forward.1} parent=35 // pred_check_branch
        %506 = sbr.rel (%p504) target = $region40
      $region39: #{set_block_forward.1} parent=35 // pred_region
        %p507 = scmp.lt.s32.totalorder %s14, 1
        %s508 = scalar_select %p507, %s14, 1
        %s509 = smul.addr %s508, 2
        %s510 = smul.addr %s509, 8
        %s511 = scalar_lea.vmem %s2, %s510
      $region40: #{set_block_forward.1} parent=35 // pred_fallthru
        _
    $region36: #{set_block_forward.1} parent=5 // pred_fallthru
      _
  $region6: #{set_block_forward.1} parent=0 // loop_footer
    %s12 = sadd.s32 1, %s8
  $region7: #{set_block_forward.1} parent=0 // loop_footer_branch
    %7 = sbr.rel target = $region3
  $region8: #{set_block_forward.1} parent=0 // loop_exit
    _

</llo_original>
